<compile_context>
chip_gen: v6e
topology: v6e:2x2x1
jax: 0.10.0
libtpu: 0.0.40
codegen_flags: <defaults>
</compile_context>

<pallas_src>
import jax
import jax.numpy as jnp
from jax.experimental import pallas as pl
from jax.experimental.pallas import tpu as pltpu


def one_hot_kernel(x_ref, o_ref):
    # x_ref : (1, 1, T)      integer labels (one batch element, one spatial tile)
    # o_ref : (1, depth, T)  one-hot output tile
    depth = o_ref.shape[1]
    x = x_ref[...].astype(jnp.int32)                                # (1, 1, T)
    # Tiny iota over the depth axis; broadcasts lazily against x in vregs.
    d_iota = jax.lax.broadcasted_iota(jnp.int32, (1, depth, 1), 1)  # (1, depth, 1)
    o_ref[...] = (x == d_iota).astype(o_ref.dtype)                  # (1, depth, T)


def _pick_spatial_tile(hw, depth, in_itemsize, out_itemsize,
                       budget_bytes=8 << 20, t_cap=8192):
    """Largest multiple of 128 that divides hw, capped by t_cap and a VMEM budget.

    Budget accounts for double-buffering of input + output blocks:
        2 * T * (in_itemsize + depth * out_itemsize) <= budget_bytes
    which keeps the footprint far below the smallest default scoped-VMEM limit
    (16 MiB on v5e; 32 MiB on v6e/v7x with 64 MiB physical on v7x).
    """
    per_lane = 2 * (in_itemsize + depth * out_itemsize)
    t_max = min(t_cap, max(128, budget_bytes // per_lane))
    best = None
    t = 128
    while t <= min(hw, t_max):
        if hw % t == 0:
            best = t
        t += 128
    if best is None:
        # hw has no multiple-of-128 divisor within budget: use the full axis
        # (block dim == full array dim is always a legal TPU block shape).
        best = hw
    return best


def one_hot_forward(x_in, depth, out_dtype=jnp.float32):
    """x_in: (B, 1, H, W) integer labels. Returns (B, depth, H, W) `out_dtype`."""
    B, C, H, W = x_in.shape
    assert C == 1, "One_Hot.forward squeezes dim 2; expects a singleton label channel"
    HW = H * W

    # Free, row-major metadata reshape (no slice, no cast, no extra HBM pass).
    x = x_in.reshape(B, 1, HW)

    in_itemsize = jnp.dtype(x.dtype).itemsize
    out_itemsize = jnp.dtype(out_dtype).itemsize
    T = _pick_spatial_tile(HW, depth, in_itemsize, out_itemsize)
    grid = (B, HW // T)

    out_flat = pl.pallas_call(
        one_hot_kernel,
        out_shape=jax.ShapeDtypeStruct((B, depth, HW), out_dtype),
        grid_spec=pltpu.PrefetchScalarGridSpec(
            num_scalar_prefetch=0,
            grid=grid,
            in_specs=[pl.BlockSpec((1, 1, T), lambda b, s: (b, 0, s))],
            out_specs=pl.BlockSpec((1, depth, T), lambda b, s: (b, 0, s)),
        ),
        compiler_params=pltpu.CompilerParams(
            dimension_semantics=("parallel", "parallel"),
        ),
        cost_estimate=pl.CostEstimate(
            flops=0,
            transcendentals=0,
            bytes_accessed=B * HW * in_itemsize + B * depth * HW * out_itemsize,
        ),
    )(x)

    # Free reshape back to NCHW.
    return out_flat.reshape(B, depth, H, W)


if __name__ == "__main__":
    depth = 4
    B, H, W = 2, 16, 16

    # Deterministic "parameter" from __init__ (identity matrix); kept for
    # reference fidelity — the kernel realizes index_select(eye, labels) as an
    # iota equality compare (gather-free on TPU).
    ones_eye = jnp.eye(depth, dtype=jnp.float32)

    key = jax.random.PRNGKey(0)
    x_in = jax.random.randint(key, (B, 1, H, W), 0, depth, dtype=jnp.int32)

    out = one_hot_forward(x_in, depth)
    out = jax.block_until_ready(out)

    # Reference check (pure JAX, mirrors the PyTorch forward exactly).
    ref = ones_eye[x_in[:, 0, :, :]]            # (B, H, W, depth)
    ref = jnp.transpose(ref, (0, 3, 1, 2))      # (B, depth, H, W)
    assert out.shape == (B, depth, H, W)
    assert out.dtype == jnp.float32
    assert bool(jnp.all(out == ref))

    print("KERNEL_OK")
</pallas_src>

<mosaic_0001>
module attributes {stable_mosaic.version = 11 : i64} {
  func.func @one_hot_kernel(%arg0: i32, %arg1: i32, %arg2: memref<1x1x256xi32, #tpu.memory_space<vmem>>, %arg3: memref<1x4x256xf32, #tpu.memory_space<vmem>>) attributes {dimension_semantics = [#tpu.dimension_semantics<parallel>, #tpu.dimension_semantics<parallel>], iteration_bounds = array<i64: 2, 1>, scalar_prefetch = 0 : i64, scratch_operands = 0 : i64, tpu.core_type = #tpu.core_type<tc>, window_params = [{transform_indices = @transform_0, window_bounds = array<i64: 1, 1, 256>}, {transform_indices = @transform_1, window_bounds = array<i64: 1, 4, 256>}]} {
    %c0 = arith.constant 0 : index
    %c0_0 = arith.constant 0 : index
    %c0_1 = arith.constant 0 : index
    %0 = vector.load %arg2[%c0, %c0_0, %c0_1] : memref<1x1x256xi32, #tpu.memory_space<vmem>>, vector<1x1x256xi32>
    %1 = tpu.iota {dimensions = array<i32: 1>} : vector<1x4x1xi32>
    %2 = vector.broadcast %0 : vector<1x1x256xi32> to vector<1x4x256xi32>
    %3 = vector.broadcast %1 : vector<1x4x1xi32> to vector<1x4x256xi32>
    %4 = arith.cmpi eq, %2, %3 : vector<1x4x256xi32>
    %5 = arith.extui %4 : vector<1x4x256xi1> to vector<1x4x256xi32>
    %6 = arith.sitofp %5 : vector<1x4x256xi32> to vector<1x4x256xf32>
    %c0_2 = arith.constant 0 : index
    %c0_3 = arith.constant 0 : index
    %c0_4 = arith.constant 0 : index
    %7 = vector.load %arg3[%c0_2, %c0_3, %c0_4] : memref<1x4x256xf32, #tpu.memory_space<vmem>>, vector<1x4x256xf32>
    tpu.vector_store %arg3[%c0_2, %c0_3, %c0_4], %6 {strides = array<i32>} : memref<1x4x256xf32, #tpu.memory_space<vmem>>, vector<1x4x256xf32>,
    return
  }
  func.func @transform_0(%arg0: i32, %arg1: i32) -> (i32, i32, i32) {
    %c0_i32 = arith.constant 0 : i32
    %c0_i32_0 = arith.constant 0 : i32
    return %arg0, %c0_i32, %arg1 : i32, i32, i32
  }
  func.func @transform_1(%arg0: i32, %arg1: i32) -> (i32, i32, i32) {
    %c0_i32 = arith.constant 0 : i32
    %c0_i32_0 = arith.constant 0 : i32
    return %arg0, %c0_i32, %arg1 : i32, i32, i32
  }
}

</mosaic_0001>

<llo_original>
// kernel: tpu_custom_call.1
$region0: #{tpu_custom_call.1}
  #allocation0 [shape = 'u32[]', space=smem, size = 0x4, offset = 0x4, fixed_abs, tag = 'smem constant byte address 0x4 - core index']
  #allocation1 [shape = 'u32[144,128]{1,0:T(1,128)}', space=vmem, size = 0x12000, scoped, tag = 'internal scratch']
  %s0 = inlined_call_operand.hbm [shape: s32[2,1,256], index: 0, kind: input, shape index: {}]
  %s1 = inlined_call_operand.hbm [shape: f32[2,4,256], index: 1, kind: output, shape index: {}]
  %s2 = sld [smem:[#allocation0]]
  $region41: #{tpu_custom_call.1} parent=0
    _
  %s4 = ssub.s32 1, %s2
  %s5 = scalar_select 0, %s4, %s2
  $region1: #{tpu_custom_call.1} parent=0
    #allocation2 [shape = 'u8[2048]{0}', space=vmem, size = 0x800, scoped, tag = 'input window, operand 0']
    #allocation3 [shape = 's32[2]{0}', space=sflag, size = 0x8, scoped, tag = 'scoped memory for tpu_custom_call.1']
    #allocation4 [shape = 's32[2]{0}', space=sflag, size = 0x8, scoped, tag = 'scoped memory for tpu_custom_call.1']
    #allocation5 [shape = 'u8[8192]{0}', space=vmem, size = 0x2000, scoped, tag = 'output window, operand 0']
    %6 = vsyncpa [#allocation3], 0
    %s7 = scalar_lea.sflag [#allocation3], 1
    %8 = vsyncpa %s7, 0
    %9 = vsyncpa [#allocation4], 0
    %s10 = scalar_lea.sflag [#allocation4], 1
    %11 = vsyncpa %s10, 0
    loop: start=0, step=1, limit=4
    $region2: #{tpu_custom_call.1} parent=1 // loop_pre_header
      _
    $region3: #{tpu_custom_call.1} parent=1 // loop_header
      %s13 = sphi 0, %s17
      %p14 = scmp.ge.s32.totalorder %s13, 4
      %s20 = sphi 0, %s32
      %s21 = sphi 0, %s28
      %s22 = sphi 0, %s20
      %s23 = sphi 0, %s21
      %s24 = sphi 0, %s22
      %s25 = sphi 0, %s23
      %s37 = sphi 0, %s39
      %s40 = sphi 0, %s37
      %s41 = sphi 0, %s40
      %s57 = sphi 0, %s41
      %s65 = sphi 0, %s67
      %s68 = sphi 0, %s65
      %s69 = sphi 0, %s68
      %s85 = sphi 0, %s69
    $region4: #{tpu_custom_call.1} parent=1 // loop_header_branch
      %16 = sbr.rel (%p14) target = $region8
    $region5: #{tpu_custom_call.1} parent=1 // loop_body
      %s18 = ssub.s32 %s13, 1
      %s19 = ssub.s32 %s13, 2
      %s26 = sadd.s32 1, %s21
      %p27 = scmp.ge.s32.totalorder %s26, 1
      %s28 = scalar_select %p27, 0, %s26
      %s29 = sadd.s32 1, %s20
      %s30 = scalar_select %p27, %s29, %s20
      %p31 = scmp.ge.s32.totalorder %s30, 2
      %s32 = scalar_select %p31, 0, %s30
      %s33 = ssub.s32 %s20, %s32
      %s34 = ssub.s32 %s21, %s28
      %s35 = sor.u32 %s33, %s34
      %p36 = scmp.eq.s32.totalorder %s35, 0
      %s38 = sadd.s32 %s37, 1
      %s39 = scalar_select %p36, %s37, %s38
      %p42 = pneg %p36
      %p43 = scmp.eq.s32.totalorder %s13, 1
      %p44 = por %p42, %p43
      %p45 = scmp.ne.s32.totalorder %s37, %s40
      %p46 = scmp.eq.s32.totalorder %s13, 0
      %p47 = por %p45, %p46
      %p48 = scmp.ne.s32.totalorder %s37, %s40
      %p49 = scmp.eq.s32.totalorder %s18, 1
      %p50 = por %p48, %p49
      %p51 = scmp.ne.s32.totalorder %s40, %s41
      %p52 = scmp.eq.s32.totalorder %s18, 0
      %p53 = por %p51, %p52
      %p54 = scmp.ne.s32.totalorder %s40, %s41
      %p55 = scmp.eq.s32.totalorder %s19, 1
      %p56 = por %p54, %p55
      %p58 = scmp.ne.s32.totalorder %s41, %s57
      %p59 = scmp.eq.s32.totalorder %s19, 0
      %p60 = por %p58, %p59
      %s61 = ssub.s32 %s20, %s32
      %s62 = ssub.s32 %s21, %s28
      %s63 = sor.u32 %s61, %s62
      %p64 = scmp.eq.s32.totalorder %s63, 0
      %s66 = sadd.s32 %s65, 1
      %s67 = scalar_select %p64, %s65, %s66
      %p70 = pneg %p64
      %p71 = scmp.eq.s32.totalorder %s13, 1
      %p72 = por %p70, %p71
      %p73 = scmp.ne.s32.totalorder %s65, %s68
      %p74 = scmp.eq.s32.totalorder %s13, 0
      %p75 = por %p73, %p74
      %p76 = scmp.ne.s32.totalorder %s65, %s68
      %p77 = scmp.eq.s32.totalorder %s18, 1
      %p78 = por %p76, %p77
      %p79 = scmp.ne.s32.totalorder %s68, %s69
      %p80 = scmp.eq.s32.totalorder %s18, 0
      %p81 = por %p79, %p80
      %p82 = scmp.ne.s32.totalorder %s68, %s69
      %p83 = scmp.eq.s32.totalorder %s19, 1
      %p84 = por %p82, %p83
      %p86 = scmp.ne.s32.totalorder %s69, %s85
      %p87 = scmp.eq.s32.totalorder %s19, 0
      %p88 = por %p86, %p87
      %p89 = scmp.le.s32.totalorder 1, %s13
      %p90 = scmp.lt.s32.totalorder %s13, 3
      %p91 = pnand %p89, %p90
      %p92 = pneg %p91
      // Predicated region
      $region9: #{tpu_custom_call.1} parent=5 // pred_check
        _
      $region10: #{tpu_custom_call.1} parent=5 // pred_check_branch
        %94 = sbr.rel (%p91) target = $region12
      $region11: #{tpu_custom_call.1} parent=5 // pred_region
        %s95 = ssub.s32 %s13, 1
      $region12: #{tpu_custom_call.1} parent=5 // pred_fallthru
        _
      %p96 = scmp.lt.s32.totalorder %s13, 2
      // Predicated region
      $region13: #{tpu_custom_call.1} parent=5 // pred_check
        %p97 = pneg %p96
      $region14: #{tpu_custom_call.1} parent=5 // pred_check_branch
        %99 = sbr.rel (%p97) target = $region16
      $region15: #{tpu_custom_call.1} parent=5 // pred_region
        // Predicated region
        $region17: #{tpu_custom_call.1} parent=15 // pred_check
          %p100 = pneg %p47
        $region18: #{tpu_custom_call.1} parent=15 // pred_check_branch
          %102 = sbr.rel (%p100) target = $region20
        $region19: #{tpu_custom_call.1} parent=15 // pred_region
          %s103 = sand.u32 %s37, 1
          %s104 = scalar_lea.sflag [#allocation3], %s103
          %s105 = sand.u32 %s37, 1
          %s106 = smul.addr %s105, 2
          %s107 = scalar_lea.vmem [#allocation2], %s106
          %s108 = smul.u32 2, %s21
          %s110 = ssub.s32 32, 32
          %111 = vsyncadd %s104, %s110
          %s112 = smul.addr %s20, 2
          %s113 = sadd.s32 %s108, %s112
          %s114 = smul.addr %s113, 16
          %s115 = scalar_lea.hbm %s0, %s114
          %s117 = sshll.u32 %s107, 4
          %s118 = int_to_ptr.vmem [resolvable:$true] %s117
          %120 = dma.hbm_to_vmem [thread:$0]  %s115, 32, %s118, %s104
        $region20: #{tpu_custom_call.1} parent=15 // pred_fallthru
          _
      $region16: #{tpu_custom_call.1} parent=5 // pred_fallthru
        _
      %p121 = scmp.le.s32.totalorder 1, %s13
      %p122 = scmp.lt.s32.totalorder %s13, 3
      %p123 = pnand %p121, %p122
      %p124 = pneg %p123
      // Predicated region
      $region21: #{tpu_custom_call.1} parent=5 // pred_check
        _
      $region22: #{tpu_custom_call.1} parent=5 // pred_check_branch
        %126 = sbr.rel (%p123) target = $region24
      $region23: #{tpu_custom_call.1} parent=5 // pred_region
        %s127 = ssub.s32 %s13, 1
        %s128 = sand.u32 %s40, 1
        %s129 = scalar_lea.sflag [#allocation3], %s128
        %s130 = sand.u32 %s40, 1
        %s131 = smul.addr %s130, 2
        %s132 = scalar_lea.vmem [#allocation2], %s131
        // Predicated region
        $region25: #{tpu_custom_call.1} parent=23 // pred_check
          %p133 = pneg %p53
        $region26: #{tpu_custom_call.1} parent=23 // pred_check_branch
          %135 = sbr.rel (%p133) target = $region28
        $region27: #{tpu_custom_call.1} parent=23 // pred_region
          %136 = dma.done %s129, 32
        $region28: #{tpu_custom_call.1} parent=23 // pred_fallthru
          _
        %s137 = sand.u32 %s40, 1
        %s138 = scalar_lea.sflag [#allocation3], %s137
        %s139 = sand.u32 %s40, 1
        %s140 = smul.addr %s139, 2
        %s141 = scalar_lea.vmem [#allocation2], %s140
        %p142 = pneg %p53
        %p143 = pneg %p50
        %p144 = pneg %p81
        %p145 = pneg %p78
        %s146 = sand.u32 %s68, 1
        %s147 = scalar_lea.sflag [#allocation4], %s146
        %s148 = sand.u32 %s68, 1
        %s149 = smul.addr %s148, 8
        %s150 = scalar_lea.vmem [#allocation5], %s149
        %s151 = smul.u32 2, %s23
        %s152 = smul.u32 2, %s23
        %v153 = vld [vmem:[%s132] sm:$0x3]
        %v154 = vlaneseq
        %v155 = vshrl.u32 %v154, 7
        %v156 = vlaneseq
        %v157 = vshrl.u32 %v156, 7
        %v158 = vsub.s32 0, %v157
        %v159 = vrot.slane %v153, %v158
        %v160 = vlaneseq
        %v161 = vshrl.u32 %v160, 7
        %v162 = vsub.s32 1, %v161
        %v163 = vrot.slane %v153, %v162
        %vm164 = vcmp.eq.s32.totalorder %v159, %v155
        %vm165 = vcmp.eq.s32.totalorder %v163, %v155
        %v166 = vsel %vm164, 1, 0
        %v167 = vsel %vm165, 1, 0
        %v168 = vcvt.s32.f32 %v166
        %v169 = vcvt.s32.f32 %v167
        %v172 = vcombine.low %v168, %v169
        %174 = vst [vmem:[%s150] sm:$0xff] %v172
        %s175 = sand.u32 %s68, 1
        %s176 = scalar_lea.sflag [#allocation4], %s175
        %s177 = sand.u32 %s68, 1
        %s178 = smul.addr %s177, 8
        %s179 = scalar_lea.vmem [#allocation5], %s178
        // Predicated region
        $region29: #{tpu_custom_call.1} parent=23 // pred_check
          %p180 = pneg %p78
        $region30: #{tpu_custom_call.1} parent=23 // pred_check_branch
          %182 = sbr.rel (%p180) target = $region32
        $region31: #{tpu_custom_call.1} parent=23 // pred_region
          %s183 = smul.u32 2, %s23
          %s185 = ssub.s32 128, 128
          %186 = vsyncadd %s176, %s185
          %s187 = smul.addr %s22, 2
          %s188 = sadd.s32 %s183, %s187
          %s189 = smul.addr %s188, 64
          %s190 = scalar_lea.hbm %s1, %s189
          %s192 = sshll.u32 %s179, 4
          %s193 = int_to_ptr.vmem [resolvable:$true] %s192
          %195 = dma.vmem_to_hbm [thread:$0]  %s193, 128, %s190, %s176
        $region32: #{tpu_custom_call.1} parent=23 // pred_fallthru
          _
      $region24: #{tpu_custom_call.1} parent=5 // pred_fallthru
        _
      %p196 = scmp.le.s32.totalorder 2, %s13
      // Predicated region
      $region33: #{tpu_custom_call.1} parent=5 // pred_check
        %p197 = pneg %p196
      $region34: #{tpu_custom_call.1} parent=5 // pred_check_branch
        %199 = sbr.rel (%p197) target = $region36
      $region35: #{tpu_custom_call.1} parent=5 // pred_region
        %s200 = ssub.s32 %s13, 2
        // Predicated region
        $region37: #{tpu_custom_call.1} parent=35 // pred_check
          %p201 = pneg %p84
        $region38: #{tpu_custom_call.1} parent=35 // pred_check_branch
          %203 = sbr.rel (%p201) target = $region40
        $region39: #{tpu_custom_call.1} parent=35 // pred_region
          %s204 = sand.u32 %s69, 1
          %s205 = scalar_lea.sflag [#allocation4], %s204
          %s206 = sand.u32 %s69, 1
          %s207 = smul.addr %s206, 8
          %s208 = scalar_lea.vmem [#allocation5], %s207
          %209 = dma.done %s205, 128
        $region40: #{tpu_custom_call.1} parent=35 // pred_fallthru
          _
      $region36: #{tpu_custom_call.1} parent=5 // pred_fallthru
        _
    $region6: #{tpu_custom_call.1} parent=1 // loop_footer
      %s17 = sadd.s32 1, %s13
    $region7: #{tpu_custom_call.1} parent=1 // loop_footer_branch
      %12 = sbr.rel target = $region3
    $region8: #{tpu_custom_call.1} parent=1 // loop_exit
      _
    %210 = vsyncpa [#allocation3], 1
    %s211 = scalar_lea.sflag [#allocation3], 1
    %212 = vsyncpa %s211, 1
    %213 = vsyncpa [#allocation4], 1
    %s214 = scalar_lea.sflag [#allocation4], 1
    %215 = vsyncpa %s214, 1

</llo_original>
